<compile_context>
chip_gen: v7x
topology: tpu7x:2x2x1
jax: 0.10.0
libtpu: 0.0.40
codegen_flags: <defaults>
</compile_context>

<pallas_src>
import functools

import jax
import jax.numpy as jnp
from jax.experimental import pallas as pl
from jax.experimental.pallas import tpu as pltpu


def _round_up(v, m):
    return ((v + m - 1) // m) * m


def _topkdis_kernel(labels_ref, x_ref, w_ref, gram_ref, out_ref, logits_acc, *,
                    top_k, batch, num_classes, targeted):
    B, N = batch, num_classes
    d_idx = pl.program_id(0)

    # ---- init logits accumulator on the first D tile -----------------------
    @pl.when(d_idx == 0)
    def _():
        logits_acc[...] = jnp.zeros_like(logits_acc)

    # ---- per-D-tile accumulation (MXU, f32 accumulate) ----------------------
    x = x_ref[...]                       # [B, TD]   (bf16 or f32)
    w = w_ref[...]                       # [TD, N]   (bf16 or f32)
    logits_acc[...] += jnp.dot(x, w, preferred_element_type=jnp.float32)

    # ---- finalize on the last D tile ----------------------------------------
    @pl.when(d_idx == pl.num_programs(0) - 1)
    def _():
        logits = logits_acc[...]                                   # [B, N] f32
        gram = gram_ref[...]                                       # [N, N] f32
        inv_km1 = 1.0 / float(top_k - 1)
        inv_b = 1.0 / float(B)

        col_ids = jax.lax.broadcasted_iota(jnp.int32, (B, N), 1)
        label = labels_ref[0]                                      # SMEM scalar
        label_onehot = (col_ids == label).astype(jnp.float32)      # [B, N]

        # tg_logits = logits[:, labels[0]]
        tg = jnp.sum(logits * label_onehot, axis=1, keepdims=True)  # [B, 1]

        # top-k along classes (iterative max + first-occurrence mask-out).
        # NOTE: two XLU lane-reductions per iteration; k is small and static,
        # the streaming matmul above dominates for realistic D.  Ties are
        # broken by first occurrence (min index among equal maxima), which
        # matches the value sum but may pick different columns than
        # jax.lax.top_k when duplicate logit values exist.
        work = logits
        nontg_sum = jnp.zeros((B, 1), jnp.float32)
        mask = jnp.zeros((B, N), jnp.float32)   # one-hot sum of topk[1:] cols
        for i in range(top_k):
            m = jnp.max(work, axis=1, keepdims=True)               # [B, 1]
            eq = work == m
            masked_ids = jnp.where(eq, col_ids, N)
            first_idx = jnp.min(masked_ids, axis=1, keepdims=True)  # [B, 1]
            first = col_ids == first_idx                            # one-hot
            if i >= 1:
                nontg_sum = nontg_sum + m
                mask = mask + first.astype(jnp.float32)
            work = jnp.where(first, -jnp.inf, work)

        nontg = nontg_sum * inv_km1                                # [B, 1]
        f = tg - nontg                                             # [B, 1]

        # grad_f = (S @ W^T) / B  with  S = onehot - mask/(k-1)
        # => ||grad_f_b||^2 = S_b G S_b^T / B^2   (no [B, D] tensor needed)
        s = label_onehot - mask * inv_km1                          # [B, N]
        sg = jnp.dot(s, gram, preferred_element_type=jnp.float32)  # [B, N]
        sq = jnp.sum(sg * s, axis=1, keepdims=True) * (inv_b * inv_b)  # [B, 1]

        # Same 1/0 hazard as the PyTorch reference (f / ||grad_f||); kept
        # un-clamped to preserve forward semantics.
        dis = f * jax.lax.rsqrt(sq)                                # [B, 1]
        loss = jnp.sum(dis, axis=0, keepdims=True) * inv_b         # [1, 1]
        if not targeted:
            loss = -loss
        out_ref[...] = loss


def precompute_gram(w_cls, compute_dtype=jnp.bfloat16):
    """G = W^T W, computed once per classifier (input-independent)."""
    w = w_cls.astype(compute_dtype)
    return jnp.dot(w.T, w, preferred_element_type=jnp.float32,
                   precision=jax.lax.Precision.HIGHEST)


def topkdis_loss(inputs, w_cls, labels, *, top_k, targeted=True,
                 compute_dtype=jnp.bfloat16, d_tile=1024, gram=None):
    """Pallas implementation of Topkdis.forward with a linear logits model."""
    B = inputs.shape[0]
    D = 1
    for d in inputs.shape[1:]:
        D *= d
    N = w_cls.shape[1]
    assert top_k >= 2, "top_k must be >= 2 (mean over topk[1:])"
    assert top_k <= N, "top_k must be <= num_classes"

    # D tile must be lane-aligned (multiple of 128) and need not exceed D;
    # pad D with zeros so the grid divides evenly (zero rows change neither
    # the logits nor W^T W).
    d_tile = max(128, (d_tile // 128) * 128)
    d_tile = min(d_tile, _round_up(D, 128))
    num_d = pl.cdiv(D, d_tile)
    d_pad = num_d * d_tile

    x_flat = inputs.reshape(B, D)
    w_kernel = w_cls
    if d_pad != D:
        x_flat = jnp.pad(x_flat, ((0, 0), (0, d_pad - D)))
        w_kernel = jnp.pad(w_kernel, ((0, d_pad - D), (0, 0)))
    x_flat = x_flat.astype(compute_dtype)
    w_kernel = w_kernel.astype(compute_dtype)

    if gram is None:
        # Hoisted out of the kernel: input-independent, cacheable across calls.
        gram = precompute_gram(w_cls, compute_dtype)
    gram = gram.astype(jnp.float32)

    kernel = functools.partial(
        _topkdis_kernel, top_k=top_k, batch=B, num_classes=N, targeted=targeted)

    itemsize = jnp.dtype(compute_dtype).itemsize

    # ---- VMEM budget, derived from actual (layout-padded) need --------------
    # double-buffered x / W tiles + gram (fetched once; budget 2x) + f32
    # logits accumulator + epilogue temp headroom.  Cap below v7x's 64 MiB;
    # floor above v5e's 16 MiB scoped default is not needed at these sizes.
    x_tile_bytes = _round_up(B, 8) * d_tile * itemsize
    w_tile_bytes = d_tile * _round_up(N, 128) * itemsize
    gram_bytes = _round_up(N, 8) * _round_up(N, 128) * 4
    acc_bytes = _round_up(B, 8) * _round_up(N, 128) * 4
    vmem_need = (2 * (x_tile_bytes + w_tile_bytes)
                 + 2 * gram_bytes + acc_bytes + 4 * acc_bytes)
    vmem_limit = int(min(48 * 1024 * 1024,
                         max(4 * 1024 * 1024, 2 * vmem_need)))

    cost = pl.CostEstimate(
        flops=2 * B * d_pad * N + 2 * B * N * N,
        transcendentals=B,
        bytes_accessed=(B * d_pad + d_pad * N) * itemsize + N * N * 4 + 4 + 4)

    out = pl.pallas_call(
        kernel,
        out_shape=jax.ShapeDtypeStruct((1, 1), jnp.float32),
        grid_spec=pltpu.PrefetchScalarGridSpec(
            num_scalar_prefetch=1,
            grid=(num_d,),
            in_specs=[
                pl.BlockSpec((B, d_tile), lambda d, lbl: (0, d)),   # x_flat
                pl.BlockSpec((d_tile, N), lambda d, lbl: (d, 0)),   # classifier W
                pl.BlockSpec((N, N), lambda d, lbl: (0, 0)),        # G = W^T W
            ],
            out_specs=pl.BlockSpec((1, 1), lambda d, lbl: (0, 0)),
            scratch_shapes=[
                pltpu.VMEM((B, N), jnp.float32),   # logits accumulator
            ],
        ),
        compiler_params=pltpu.CompilerParams(
            dimension_semantics=("arbitrary",),
            vmem_limit_bytes=vmem_limit),
        cost_estimate=cost,
    )(labels.astype(jnp.int32), x_flat, w_kernel, gram)
    return out[0, 0]


def reference_loss(inputs, w_cls, labels, *, top_k, targeted=True):
    """Pure-JAX mirror of the PyTorch forward (uses jax.grad like autograd)."""
    def logits_fn(x):
        return x.reshape(x.shape[0], -1) @ w_cls

    logits = logits_fn(inputs)
    topk_vals, _ = jax.lax.top_k(logits, top_k)
    nontg_logits = jnp.mean(topk_vals[:, 1:], axis=1)
    tg_logits = logits[:, labels[0]]

    def nontg_mean(x):
        tv, _ = jax.lax.top_k(logits_fn(x), top_k)
        return jnp.mean(tv[:, 1:], axis=1).mean()

    def tg_mean(x):
        return logits_fn(x)[:, labels[0]].mean()

    nontg_grads = jax.grad(nontg_mean)(inputs)
    tg_grads = jax.grad(tg_mean)(inputs)

    f = tg_logits - nontg_logits
    grad_f = tg_grads - nontg_grads
    norm = jnp.sqrt(jnp.sum(grad_f * grad_f, axis=(1, 2, 3)))
    dis = f / norm
    loss = dis.mean()
    return loss if targeted else -loss


if __name__ == "__main__":
    key = jax.random.PRNGKey(0)
    k_x, k_w = jax.random.split(key)

    B, C, H, W_sp = 2, 4, 16, 16          # small NCHW input
    num_classes, top_k = 16, 5
    targeted = True

    inputs = jax.random.normal(k_x, (B, C, H, W_sp), dtype=jnp.float32)
    w_cls = 0.05 * jax.random.normal(
        k_w, (C * H * W_sp, num_classes), dtype=jnp.float32)
    labels = jnp.array([3], dtype=jnp.int32)   # self.labels, labels[0] used

    # --- f32 path: exact check against the autograd-style reference ---------
    loss_f32 = topkdis_loss(inputs, w_cls, labels, top_k=top_k,
                            targeted=targeted, compute_dtype=jnp.float32)
    loss_f32 = jax.block_until_ready(loss_f32)
    ref_f32 = reference_loss(inputs, w_cls, labels, top_k=top_k,
                             targeted=targeted)
    assert jnp.allclose(loss_f32, ref_f32, rtol=1e-3, atol=1e-4), (
        float(loss_f32), float(ref_f32))

    # --- bf16 path (default): check against reference on bf16-rounded ops ---
    # (also exercises the cached-Gram path a caller would use in a loop)
    gram_bf16 = precompute_gram(w_cls, jnp.bfloat16)
    loss_bf16 = topkdis_loss(inputs, w_cls, labels, top_k=top_k,
                             targeted=targeted, compute_dtype=jnp.bfloat16,
                             gram=gram_bf16)
    loss_bf16 = jax.block_until_ready(loss_bf16)
    inputs_r = inputs.astype(jnp.bfloat16).astype(jnp.float32)
    w_r = w_cls.astype(jnp.bfloat16).astype(jnp.float32)
    ref_bf16 = reference_loss(inputs_r, w_r, labels, top_k=top_k,
                              targeted=targeted)
    assert jnp.allclose(loss_bf16, ref_bf16, rtol=1e-2, atol=1e-3), (
        float(loss_bf16), float(ref_bf16))

    print("KERNEL_OK")
</pallas_src>

<mosaic_0001>
module attributes {stable_mosaic.version = 11 : i64} {
  func.func @_topkdis_kernel(%arg0: i32, %arg1: memref<1xi32, #tpu.memory_space<smem>>, %arg2: memref<2x1024xf32, #tpu.memory_space<vmem>>, %arg3: memref<1024x16xf32, #tpu.memory_space<vmem>>, %arg4: memref<16x16xf32, #tpu.memory_space<vmem>>, %arg5: memref<1x1xf32, #tpu.memory_space<vmem>>, %arg6: memref<2x16xf32, #tpu.memory_space<vmem>>) attributes {dimension_semantics = [#tpu.dimension_semantics<arbitrary>], iteration_bounds = array<i64: 1>, scalar_prefetch = 1 : i64, scratch_operands = 1 : i64, tpu.core_type = #tpu.core_type<tc>, window_params = [{transform_indices = @transform_0, window_bounds = array<i64: 2, 1024>}, {transform_indices = @transform_1, window_bounds = array<i64: 1024, 16>}, {pipeline_mode = #tpu.pipeline_mode<synchronous>, transform_indices = @transform_2, window_bounds = array<i64: 16, 16>}, {pipeline_mode = #tpu.pipeline_mode<synchronous>, transform_indices = @transform_3, window_bounds = array<i64: 1, 1>}]} {
    %c0_i32 = arith.constant 0 : i32
    %0 = arith.cmpi eq, %arg0, %c0_i32 : i32
    %1 = arith.extui %0 : i1 to i32
    %c0_i32_0 = arith.constant 0 : i32
    %2 = arith.cmpi ne, %1, %c0_i32_0 : i32
    scf.if %2 {
      %cst_10 = arith.constant 0.000000e+00 : f32
      %12 = vector.broadcast %cst_10 : f32 to vector<2x16xf32>
      %c0_11 = arith.constant 0 : index
      %c0_12 = arith.constant 0 : index
      %13 = vector.load %arg6[%c0_11, %c0_12] : memref<2x16xf32, #tpu.memory_space<vmem>>, vector<2x16xf32>
      tpu.vector_store %arg6[%c0_11, %c0_12], %12 {strides = array<i32>} : memref<2x16xf32, #tpu.memory_space<vmem>>, vector<2x16xf32>,
    } else {
    }
    %c0 = arith.constant 0 : index
    %c0_1 = arith.constant 0 : index
    %3 = vector.load %arg2[%c0, %c0_1] : memref<2x1024xf32, #tpu.memory_space<vmem>>, vector<2x1024xf32>
    %c0_2 = arith.constant 0 : index
    %c0_3 = arith.constant 0 : index
    %4 = vector.load %arg3[%c0_2, %c0_3] : memref<1024x16xf32, #tpu.memory_space<vmem>>, vector<1024x16xf32>
    %c0_4 = arith.constant 0 : index
    %c0_5 = arith.constant 0 : index
    %5 = vector.load %arg6[%c0_4, %c0_5] : memref<2x16xf32, #tpu.memory_space<vmem>>, vector<2x16xf32>
    %cst = arith.constant dense<0.000000e+00> : vector<2x16xf32>
    %6 = tpu.matmul %3, %4, %cst {dimension_numbers = #tpu.dot_dimension_numbers<[1], [0], [0], [1], [0, 0, 1, 1], [], []>} : vector<2x1024xf32>, vector<1024x16xf32>, vector<2x16xf32> -> vector<2x16xf32>
    %7 = arith.addf %5, %6 : vector<2x16xf32>
    %c0_6 = arith.constant 0 : index
    %c0_7 = arith.constant 0 : index
    %8 = vector.load %arg6[%c0_6, %c0_7] : memref<2x16xf32, #tpu.memory_space<vmem>>, vector<2x16xf32>
    tpu.vector_store %arg6[%c0_6, %c0_7], %7 {strides = array<i32>} : memref<2x16xf32, #tpu.memory_space<vmem>>, vector<2x16xf32>,
    %c0_i32_8 = arith.constant 0 : i32
    %9 = arith.cmpi eq, %arg0, %c0_i32_8 : i32
    %10 = arith.extui %9 : i1 to i32
    %c0_i32_9 = arith.constant 0 : i32
    %11 = arith.cmpi ne, %10, %c0_i32_9 : i32
    scf.if %11 {
      %c0_10 = arith.constant 0 : index
      %c0_11 = arith.constant 0 : index
      %12 = vector.load %arg6[%c0_10, %c0_11] : memref<2x16xf32, #tpu.memory_space<vmem>>, vector<2x16xf32>
      %c0_12 = arith.constant 0 : index
      %c0_13 = arith.constant 0 : index
      %13 = vector.load %arg4[%c0_12, %c0_13] : memref<16x16xf32, #tpu.memory_space<vmem>>, vector<16x16xf32>
      %14 = tpu.iota {dimensions = array<i32: 1>} : vector<2x16xi32>
      %c0_14 = arith.constant 0 : index
      %15 = memref.load %arg1[%c0_14] : memref<1xi32, #tpu.memory_space<smem>>
      %16 = vector.broadcast %15 : i32 to vector<2x16xi32>
      %17 = arith.cmpi eq, %14, %16 : vector<2x16xi32>
      %18 = arith.extui %17 : vector<2x16xi1> to vector<2x16xi32>
      %19 = arith.sitofp %18 : vector<2x16xi32> to vector<2x16xf32>
      %20 = arith.mulf %12, %19 : vector<2x16xf32>
      %cst_15 = arith.constant dense<0.000000e+00> : vector<2xf32>
      %21 = vector.multi_reduction <add>, %20, %cst_15 [1] : vector<2x16xf32> to vector<2xf32>
      %22 = vector.shape_cast %21 : vector<2xf32> to vector<2x1xf32>
      %cst_16 = arith.constant 0.000000e+00 : f32
      %23 = vector.broadcast %cst_16 : f32 to vector<2x1xf32>
      %cst_17 = arith.constant 0.000000e+00 : f32
      %24 = vector.broadcast %cst_17 : f32 to vector<2x16xf32>
      %cst_18 = arith.constant dense<0xFF800000> : vector<2xf32>
      %25 = vector.multi_reduction <maximumf>, %12, %cst_18 [1] : vector<2x16xf32> to vector<2xf32>
      %26 = vector.shape_cast %25 : vector<2xf32> to vector<2x1xf32>
      %27 = vector.broadcast %26 : vector<2x1xf32> to vector<2x16xf32>
      %28 = arith.cmpf oeq, %12, %27 : vector<2x16xf32>
      %c16_i32 = arith.constant 16 : i32
      %29 = vector.broadcast %c16_i32 : i32 to vector<2x16xi32>
      %30 = arith.select %28, %14, %29 : vector<2x16xi1>, vector<2x16xi32>
      %cst_19 = arith.constant dense<2147483647> : vector<2xi32>
      %31 = vector.multi_reduction <minsi>, %30, %cst_19 [1] : vector<2x16xi32> to vector<2xi32>
      %32 = vector.shape_cast %31 : vector<2xi32> to vector<2x1xi32>
      %33 = vector.broadcast %32 : vector<2x1xi32> to vector<2x16xi32>
      %34 = arith.cmpi eq, %14, %33 : vector<2x16xi32>
      %cst_20 = arith.constant 0xFF800000 : f32
      %35 = vector.broadcast %cst_20 : f32 to vector<2x16xf32>
      %36 = arith.select %34, %35, %12 : vector<2x16xi1>, vector<2x16xf32>
      %cst_21 = arith.constant dense<0xFF800000> : vector<2xf32>
      %37 = vector.multi_reduction <maximumf>, %36, %cst_21 [1] : vector<2x16xf32> to vector<2xf32>
      %38 = vector.shape_cast %37 : vector<2xf32> to vector<2x1xf32>
      %39 = vector.broadcast %38 : vector<2x1xf32> to vector<2x16xf32>
      %40 = arith.cmpf oeq, %36, %39 : vector<2x16xf32>
      %c16_i32_22 = arith.constant 16 : i32
      %41 = vector.broadcast %c16_i32_22 : i32 to vector<2x16xi32>
      %42 = arith.select %40, %14, %41 : vector<2x16xi1>, vector<2x16xi32>
      %cst_23 = arith.constant dense<2147483647> : vector<2xi32>
      %43 = vector.multi_reduction <minsi>, %42, %cst_23 [1] : vector<2x16xi32> to vector<2xi32>
      %44 = vector.shape_cast %43 : vector<2xi32> to vector<2x1xi32>
      %45 = vector.broadcast %44 : vector<2x1xi32> to vector<2x16xi32>
      %46 = arith.cmpi eq, %14, %45 : vector<2x16xi32>
      %47 = arith.addf %23, %38 : vector<2x1xf32>
      %48 = arith.extui %46 : vector<2x16xi1> to vector<2x16xi32>
      %49 = arith.sitofp %48 : vector<2x16xi32> to vector<2x16xf32>
      %50 = arith.addf %24, %49 : vector<2x16xf32>
      %cst_24 = arith.constant 0xFF800000 : f32
      %51 = vector.broadcast %cst_24 : f32 to vector<2x16xf32>
      %52 = arith.select %46, %51, %36 : vector<2x16xi1>, vector<2x16xf32>
      %cst_25 = arith.constant dense<0xFF800000> : vector<2xf32>
      %53 = vector.multi_reduction <maximumf>, %52, %cst_25 [1] : vector<2x16xf32> to vector<2xf32>
      %54 = vector.shape_cast %53 : vector<2xf32> to vector<2x1xf32>
      %55 = vector.broadcast %54 : vector<2x1xf32> to vector<2x16xf32>
      %56 = arith.cmpf oeq, %52, %55 : vector<2x16xf32>
      %c16_i32_26 = arith.constant 16 : i32
      %57 = vector.broadcast %c16_i32_26 : i32 to vector<2x16xi32>
      %58 = arith.select %56, %14, %57 : vector<2x16xi1>, vector<2x16xi32>
      %cst_27 = arith.constant dense<2147483647> : vector<2xi32>
      %59 = vector.multi_reduction <minsi>, %58, %cst_27 [1] : vector<2x16xi32> to vector<2xi32>
      %60 = vector.shape_cast %59 : vector<2xi32> to vector<2x1xi32>
      %61 = vector.broadcast %60 : vector<2x1xi32> to vector<2x16xi32>
      %62 = arith.cmpi eq, %14, %61 : vector<2x16xi32>
      %63 = arith.addf %47, %54 : vector<2x1xf32>
      %64 = arith.extui %62 : vector<2x16xi1> to vector<2x16xi32>
      %65 = arith.sitofp %64 : vector<2x16xi32> to vector<2x16xf32>
      %66 = arith.addf %50, %65 : vector<2x16xf32>
      %cst_28 = arith.constant 0xFF800000 : f32
      %67 = vector.broadcast %cst_28 : f32 to vector<2x16xf32>
      %68 = arith.select %62, %67, %52 : vector<2x16xi1>, vector<2x16xf32>
      %cst_29 = arith.constant dense<0xFF800000> : vector<2xf32>
      %69 = vector.multi_reduction <maximumf>, %68, %cst_29 [1] : vector<2x16xf32> to vector<2xf32>
      %70 = vector.shape_cast %69 : vector<2xf32> to vector<2x1xf32>
      %71 = vector.broadcast %70 : vector<2x1xf32> to vector<2x16xf32>
      %72 = arith.cmpf oeq, %68, %71 : vector<2x16xf32>
      %c16_i32_30 = arith.constant 16 : i32
      %73 = vector.broadcast %c16_i32_30 : i32 to vector<2x16xi32>
      %74 = arith.select %72, %14, %73 : vector<2x16xi1>, vector<2x16xi32>
      %cst_31 = arith.constant dense<2147483647> : vector<2xi32>
      %75 = vector.multi_reduction <minsi>, %74, %cst_31 [1] : vector<2x16xi32> to vector<2xi32>
      %76 = vector.shape_cast %75 : vector<2xi32> to vector<2x1xi32>
      %77 = vector.broadcast %76 : vector<2x1xi32> to vector<2x16xi32>
      %78 = arith.cmpi eq, %14, %77 : vector<2x16xi32>
      %79 = arith.addf %63, %70 : vector<2x1xf32>
      %80 = arith.extui %78 : vector<2x16xi1> to vector<2x16xi32>
      %81 = arith.sitofp %80 : vector<2x16xi32> to vector<2x16xf32>
      %82 = arith.addf %66, %81 : vector<2x16xf32>
      %cst_32 = arith.constant 0xFF800000 : f32
      %83 = vector.broadcast %cst_32 : f32 to vector<2x16xf32>
      %84 = arith.select %78, %83, %68 : vector<2x16xi1>, vector<2x16xf32>
      %cst_33 = arith.constant dense<0xFF800000> : vector<2xf32>
      %85 = vector.multi_reduction <maximumf>, %84, %cst_33 [1] : vector<2x16xf32> to vector<2xf32>
      %86 = vector.shape_cast %85 : vector<2xf32> to vector<2x1xf32>
      %87 = vector.broadcast %86 : vector<2x1xf32> to vector<2x16xf32>
      %88 = arith.cmpf oeq, %84, %87 : vector<2x16xf32>
      %c16_i32_34 = arith.constant 16 : i32
      %89 = vector.broadcast %c16_i32_34 : i32 to vector<2x16xi32>
      %90 = arith.select %88, %14, %89 : vector<2x16xi1>, vector<2x16xi32>
      %cst_35 = arith.constant dense<2147483647> : vector<2xi32>
      %91 = vector.multi_reduction <minsi>, %90, %cst_35 [1] : vector<2x16xi32> to vector<2xi32>
      %92 = vector.shape_cast %91 : vector<2xi32> to vector<2x1xi32>
      %93 = vector.broadcast %92 : vector<2x1xi32> to vector<2x16xi32>
      %94 = arith.cmpi eq, %14, %93 : vector<2x16xi32>
      %95 = arith.addf %79, %86 : vector<2x1xf32>
      %96 = arith.extui %94 : vector<2x16xi1> to vector<2x16xi32>
      %97 = arith.sitofp %96 : vector<2x16xi32> to vector<2x16xf32>
      %98 = arith.addf %82, %97 : vector<2x16xf32>
      %cst_36 = arith.constant 2.500000e-01 : f32
      %99 = vector.broadcast %cst_36 : f32 to vector<2x1xf32>
      %100 = arith.mulf %95, %99 : vector<2x1xf32>
      %101 = arith.subf %22, %100 : vector<2x1xf32>
      %cst_37 = arith.constant 2.500000e-01 : f32
      %102 = vector.broadcast %cst_37 : f32 to vector<2x16xf32>
      %103 = arith.mulf %98, %102 : vector<2x16xf32>
      %104 = arith.subf %19, %103 : vector<2x16xf32>
      %cst_38 = arith.constant dense<0.000000e+00> : vector<2x16xf32>
      %105 = tpu.matmul %104, %13, %cst_38 {dimension_numbers = #tpu.dot_dimension_numbers<[1], [0], [0], [1], [0, 0, 1, 1], [], []>} : vector<2x16xf32>, vector<16x16xf32>, vector<2x16xf32> -> vector<2x16xf32>
      %106 = arith.mulf %105, %104 : vector<2x16xf32>
      %cst_39 = arith.constant dense<0.000000e+00> : vector<2xf32>
      %107 = vector.multi_reduction <add>, %106, %cst_39 [1] : vector<2x16xf32> to vector<2xf32>
      %108 = vector.shape_cast %107 : vector<2xf32> to vector<2x1xf32>
      %cst_40 = arith.constant 2.500000e-01 : f32
      %109 = vector.broadcast %cst_40 : f32 to vector<2x1xf32>
      %110 = arith.mulf %108, %109 : vector<2x1xf32>
      %111 = math.rsqrt %110 : vector<2x1xf32>
      %112 = arith.mulf %101, %111 : vector<2x1xf32>
      %cst_41 = arith.constant dense<0.000000e+00> : vector<1xf32>
      %113 = vector.multi_reduction <add>, %112, %cst_41 [0] : vector<2x1xf32> to vector<1xf32>
      %114 = vector.shape_cast %113 : vector<1xf32> to vector<1x1xf32>
      %cst_42 = arith.constant 5.000000e-01 : f32
      %115 = vector.broadcast %cst_42 : f32 to vector<1x1xf32>
      %116 = arith.mulf %114, %115 : vector<1x1xf32>
      %c0_43 = arith.constant 0 : index
      %c0_44 = arith.constant 0 : index
      %117 = vector.load %arg5[%c0_43, %c0_44] : memref<1x1xf32, #tpu.memory_space<vmem>>, vector<1x1xf32>
      tpu.vector_store %arg5[%c0_43, %c0_44], %116 {strides = array<i32>} : memref<1x1xf32, #tpu.memory_space<vmem>>, vector<1x1xf32>,
    } else {
    }
    return
  }
  func.func @transform_0(%arg0: i32, %arg1: memref<1xi32, #tpu.memory_space<smem>>) -> (i32, i32) {
    %c0_i32 = arith.constant 0 : i32
    %c0_i32_0 = arith.constant 0 : i32
    return %c0_i32, %arg0 : i32, i32
  }
  func.func @transform_1(%arg0: i32, %arg1: memref<1xi32, #tpu.memory_space<smem>>) -> (i32, i32) {
    %c0_i32 = arith.constant 0 : i32
    %c0_i32_0 = arith.constant 0 : i32
    return %arg0, %c0_i32 : i32, i32
  }
  func.func @transform_2(%arg0: i32, %arg1: memref<1xi32, #tpu.memory_space<smem>>) -> (i32, i32) {
    %c0_i32 = arith.constant 0 : i32
    %c0_i32_0 = arith.constant 0 : i32
    %c0_i32_1 = arith.constant 0 : i32
    return %c0_i32, %c0_i32_0 : i32, i32
  }
  func.func @transform_3(%arg0: i32, %arg1: memref<1xi32, #tpu.memory_space<smem>>) -> (i32, i32) {
    %c0_i32 = arith.constant 0 : i32
    %c0_i32_0 = arith.constant 0 : i32
    %c0_i32_1 = arith.constant 0 : i32
    return %c0_i32, %c0_i32_0 : i32, i32
  }
}

</mosaic_0001>

<llo_original>
// kernel: tpu_custom_call.1
$region0: #{tpu_custom_call.1}
  #allocation0 [shape = 'u32[]', space=smem, size = 0x4, offset = 0x4, fixed_abs, tag = 'smem constant byte address 0x4 - core index']
  #allocation1 [shape = 'u32[144,128]{1,0:T(1,128)}', space=vmem, size = 0x12000, scoped, tag = 'internal scratch']
  #allocation2 [shape = 'f32[2,16]{1,0:T(2,128)}', space=vmem, size = 0x400, scoped, tag = 'scratch operand']
  #allocation3 [shape = 's32[1]{0}', space=sflag, size = 0x4, scoped, tag = 'scoped memory for tpu_custom_call.1']
  #allocation4 [shape = 's32[1]{0:T(128)S(6)}', space=smem, size = 0x200, scoped, tag = 'prefetched SMEM operand 0']
  %s0 = inlined_call_operand.<no memory space> [shape: s32[1], index: 0, kind: input, shape index: {}]
  %s1 = inlined_call_operand.vmem [shape: f32[2,1024], index: 1, kind: input, shape index: {}]
  %s2 = inlined_call_operand.vmem [shape: f32[1024,16], index: 2, kind: input, shape index: {}]
  %s3 = inlined_call_operand.vmem [shape: f32[16,16], index: 3, kind: input, shape index: {}]
  %s4 = inlined_call_operand.hbm [shape: f32[1,1], index: 4, kind: output, shape index: {}]
  %s5 = sld [smem:[#allocation0]]
  $region30: #{tpu_custom_call.1} parent=0
    _
  %s7 = ssub.s32 1, %s5
  %s8 = scalar_select 0, %s7, %s5
  %9 = sst [smem:[#allocation4]] %s0
  $region1: #{tpu_custom_call.1} parent=0
    #allocation5 [shape = 'u8[512]{0}', space=vmem, size = 0x400, scoped, tag = 'output window, operand 0, single buffered']
    #allocation6 [shape = 's32[1]{0}', space=sflag, size = 0x4, scoped, tag = 'scoped memory for tpu_custom_call.1']
    %10 = vsyncpa [#allocation6], 0
    // Predicated region
    $region2: #{tpu_custom_call.1} parent=1 // pred_check
      _
    $region3: #{tpu_custom_call.1} parent=1 // pred_check_branch
      %12 = sbr.rel (0) target = $region5
    $region4: #{tpu_custom_call.1} parent=1 // pred_region
      _
    $region5: #{tpu_custom_call.1} parent=1 // pred_fallthru
      _
    // Predicated region
    $region6: #{tpu_custom_call.1} parent=1 // pred_check
      _
    $region7: #{tpu_custom_call.1} parent=1 // pred_check_branch
      %14 = sbr.rel (0) target = $region9
    $region8: #{tpu_custom_call.1} parent=1 // pred_region
      _
    $region9: #{tpu_custom_call.1} parent=1 // pred_fallthru
      _
    // Predicated region
    $region10: #{tpu_custom_call.1} parent=1 // pred_check
      _
    $region11: #{tpu_custom_call.1} parent=1 // pred_check_branch
      %16 = sbr.rel (0) target = $region13
    $region12: #{tpu_custom_call.1} parent=1 // pred_region
      _
    $region13: #{tpu_custom_call.1} parent=1 // pred_fallthru
      _
    %p17 = scmp.eq.s32.totalorder 0, 0
    // Predicated region
    $region14: #{tpu_custom_call.1} parent=1 // pred_check
      %p18 = pneg %p17
    $region15: #{tpu_custom_call.1} parent=1 // pred_check_branch
      %20 = sbr.rel (%p18) target = $region17
    $region16: #{tpu_custom_call.1} parent=1 // pred_region
      %vm21 = vcmask 123904
      %22 = vst.msk [vmem:[#allocation2] sm:$0x3] %vm21, 0.0
    $region17: #{tpu_custom_call.1} parent=1 // pred_fallthru
      _
    %v23 = vld [vmem:[%s1] sm:$0xff]
    %v24 = vld [vmem:[%s1 + $0x8] sm:$0xff]
    %v25 = vld [vmem:[%s2] sm:$0xff]
    %v26 = vld [vmem:[%s2 + $0x8] sm:$0xff]
    %v27 = vld [vmem:[%s2 + $0x10] sm:$0xff]
    %v28 = vld [vmem:[%s2 + $0x18] sm:$0xff]
    %v29 = vld [vmem:[%s2 + $0x20] sm:$0xff]
    %v30 = vld [vmem:[%s2 + $0x28] sm:$0xff]
    %v31 = vld [vmem:[%s2 + $0x30] sm:$0xff]
    %v32 = vld [vmem:[%s2 + $0x38] sm:$0xff]
    %v33 = vld [vmem:[%s2 + $0x40] sm:$0xff]
    %v34 = vld [vmem:[%s2 + $0x48] sm:$0xff]
    %v35 = vld [vmem:[%s2 + $0x50] sm:$0xff]
    %v36 = vld [vmem:[%s2 + $0x58] sm:$0xff]
    %v37 = vld [vmem:[%s2 + $0x60] sm:$0xff]
    %v38 = vld [vmem:[%s2 + $0x68] sm:$0xff]
    %v39 = vld [vmem:[%s2 + $0x70] sm:$0xff]
    %v40 = vld [vmem:[%s2 + $0x78] sm:$0xff]
    %v41 = vld [vmem:[%s2 + $0x80] sm:$0xff]
    %v42 = vld [vmem:[%s2 + $0x88] sm:$0xff]
    %v43 = vld [vmem:[%s2 + $0x90] sm:$0xff]
    %v44 = vld [vmem:[%s2 + $0x98] sm:$0xff]
    %v45 = vld [vmem:[%s2 + $0xa0] sm:$0xff]
    %v46 = vld [vmem:[%s2 + $0xa8] sm:$0xff]
    %v47 = vld [vmem:[%s2 + $0xb0] sm:$0xff]
    %v48 = vld [vmem:[%s2 + $0xb8] sm:$0xff]
    %v49 = vld [vmem:[%s2 + $0xc0] sm:$0xff]
    %v50 = vld [vmem:[%s2 + $0xc8] sm:$0xff]
    %v51 = vld [vmem:[%s2 + $0xd0] sm:$0xff]
    %v52 = vld [vmem:[%s2 + $0xd8] sm:$0xff]
    %v53 = vld [vmem:[%s2 + $0xe0] sm:$0xff]
    %v54 = vld [vmem:[%s2 + $0xe8] sm:$0xff]
    %v55 = vld [vmem:[%s2 + $0xf0] sm:$0xff]
    %v56 = vld [vmem:[%s2 + $0xf8] sm:$0xff]
    %v57 = vld [vmem:[%s2 + $0x100] sm:$0xff]
    %v58 = vld [vmem:[%s2 + $0x108] sm:$0xff]
    %v59 = vld [vmem:[%s2 + $0x110] sm:$0xff]
    %v60 = vld [vmem:[%s2 + $0x118] sm:$0xff]
    %v61 = vld [vmem:[%s2 + $0x120] sm:$0xff]
    %v62 = vld [vmem:[%s2 + $0x128] sm:$0xff]
    %v63 = vld [vmem:[%s2 + $0x130] sm:$0xff]
    %v64 = vld [vmem:[%s2 + $0x138] sm:$0xff]
    %v65 = vld [vmem:[%s2 + $0x140] sm:$0xff]
    %v66 = vld [vmem:[%s2 + $0x148] sm:$0xff]
    %v67 = vld [vmem:[%s2 + $0x150] sm:$0xff]
    %v68 = vld [vmem:[%s2 + $0x158] sm:$0xff]
    %v69 = vld [vmem:[%s2 + $0x160] sm:$0xff]
    %v70 = vld [vmem:[%s2 + $0x168] sm:$0xff]
    %v71 = vld [vmem:[%s2 + $0x170] sm:$0xff]
    %v72 = vld [vmem:[%s2 + $0x178] sm:$0xff]
    %v73 = vld [vmem:[%s2 + $0x180] sm:$0xff]
    %v74 = vld [vmem:[%s2 + $0x188] sm:$0xff]
    %v75 = vld [vmem:[%s2 + $0x190] sm:$0xff]
    %v76 = vld [vmem:[%s2 + $0x198] sm:$0xff]
    %v77 = vld [vmem:[%s2 + $0x1a0] sm:$0xff]
    %v78 = vld [vmem:[%s2 + $0x1a8] sm:$0xff]
    %v79 = vld [vmem:[%s2 + $0x1b0] sm:$0xff]
    %v80 = vld [vmem:[%s2 + $0x1b8] sm:$0xff]
    %v81 = vld [vmem:[%s2 + $0x1c0] sm:$0xff]
    %v82 = vld [vmem:[%s2 + $0x1c8] sm:$0xff]
    %v83 = vld [vmem:[%s2 + $0x1d0] sm:$0xff]
    %v84 = vld [vmem:[%s2 + $0x1d8] sm:$0xff]
    %v85 = vld [vmem:[%s2 + $0x1e0] sm:$0xff]
    %v86 = vld [vmem:[%s2 + $0x1e8] sm:$0xff]
    %v87 = vld [vmem:[%s2 + $0x1f0] sm:$0xff]
    %v88 = vld [vmem:[%s2 + $0x1f8] sm:$0xff]
    %v89 = vld [vmem:[%s2 + $0x200] sm:$0xff]
    %v90 = vld [vmem:[%s2 + $0x208] sm:$0xff]
    %v91 = vld [vmem:[%s2 + $0x210] sm:$0xff]
    %v92 = vld [vmem:[%s2 + $0x218] sm:$0xff]
    %v93 = vld [vmem:[%s2 + $0x220] sm:$0xff]
    %v94 = vld [vmem:[%s2 + $0x228] sm:$0xff]
    %v95 = vld [vmem:[%s2 + $0x230] sm:$0xff]
    %v96 = vld [vmem:[%s2 + $0x238] sm:$0xff]
    %v97 = vld [vmem:[%s2 + $0x240] sm:$0xff]
    %v98 = vld [vmem:[%s2 + $0x248] sm:$0xff]
    %v99 = vld [vmem:[%s2 + $0x250] sm:$0xff]
    %v100 = vld [vmem:[%s2 + $0x258] sm:$0xff]
    %v101 = vld [vmem:[%s2 + $0x260] sm:$0xff]
    %v102 = vld [vmem:[%s2 + $0x268] sm:$0xff]
    %v103 = vld [vmem:[%s2 + $0x270] sm:$0xff]
    %v104 = vld [vmem:[%s2 + $0x278] sm:$0xff]
    %v105 = vld [vmem:[%s2 + $0x280] sm:$0xff]
    %v106 = vld [vmem:[%s2 + $0x288] sm:$0xff]
    %v107 = vld [vmem:[%s2 + $0x290] sm:$0xff]
    %v108 = vld [vmem:[%s2 + $0x298] sm:$0xff]
    %v109 = vld [vmem:[%s2 + $0x2a0] sm:$0xff]
    %v110 = vld [vmem:[%s2 + $0x2a8] sm:$0xff]
    %v111 = vld [vmem:[%s2 + $0x2b0] sm:$0xff]
    %v112 = vld [vmem:[%s2 + $0x2b8] sm:$0xff]
    %v113 = vld [vmem:[%s2 + $0x2c0] sm:$0xff]
    %v114 = vld [vmem:[%s2 + $0x2c8] sm:$0xff]
    %v115 = vld [vmem:[%s2 + $0x2d0] sm:$0xff]
    %v116 = vld [vmem:[%s2 + $0x2d8] sm:$0xff]
    %v117 = vld [vmem:[%s2 + $0x2e0] sm:$0xff]
    %v118 = vld [vmem:[%s2 + $0x2e8] sm:$0xff]
    %v119 = vld [vmem:[%s2 + $0x2f0] sm:$0xff]
    %v120 = vld [vmem:[%s2 + $0x2f8] sm:$0xff]
    %v121 = vld [vmem:[%s2 + $0x300] sm:$0xff]
    %v122 = vld [vmem:[%s2 + $0x308] sm:$0xff]
    %v123 = vld [vmem:[%s2 + $0x310] sm:$0xff]
    %v124 = vld [vmem:[%s2 + $0x318] sm:$0xff]
    %v125 = vld [vmem:[%s2 + $0x320] sm:$0xff]
    %v126 = vld [vmem:[%s2 + $0x328] sm:$0xff]
    %v127 = vld [vmem:[%s2 + $0x330] sm:$0xff]
    %v128 = vld [vmem:[%s2 + $0x338] sm:$0xff]
    %v129 = vld [vmem:[%s2 + $0x340] sm:$0xff]
    %v130 = vld [vmem:[%s2 + $0x348] sm:$0xff]
    %v131 = vld [vmem:[%s2 + $0x350] sm:$0xff]
    %v132 = vld [vmem:[%s2 + $0x358] sm:$0xff]
    %v133 = vld [vmem:[%s2 + $0x360] sm:$0xff]
    %v134 = vld [vmem:[%s2 + $0x368] sm:$0xff]
    %v135 = vld [vmem:[%s2 + $0x370] sm:$0xff]
    %v136 = vld [vmem:[%s2 + $0x378] sm:$0xff]
    %v137 = vld [vmem:[%s2 + $0x380] sm:$0xff]
    %v138 = vld [vmem:[%s2 + $0x388] sm:$0xff]
    %v139 = vld [vmem:[%s2 + $0x390] sm:$0xff]
    %v140 = vld [vmem:[%s2 + $0x398] sm:$0xff]
    %v141 = vld [vmem:[%s2 + $0x3a0] sm:$0xff]
    %v142 = vld [vmem:[%s2 + $0x3a8] sm:$0xff]
    %v143 = vld [vmem:[%s2 + $0x3b0] sm:$0xff]
    %v144 = vld [vmem:[%s2 + $0x3b8] sm:$0xff]
    %v145 = vld [vmem:[%s2 + $0x3c0] sm:$0xff]
    %v146 = vld [vmem:[%s2 + $0x3c8] sm:$0xff]
    %v147 = vld [vmem:[%s2 + $0x3d0] sm:$0xff]
    %v148 = vld [vmem:[%s2 + $0x3d8] sm:$0xff]
    %v149 = vld [vmem:[%s2 + $0x3e0] sm:$0xff]
    %v150 = vld [vmem:[%s2 + $0x3e8] sm:$0xff]
    %v151 = vld [vmem:[%s2 + $0x3f0] sm:$0xff]
    %v152 = vld [vmem:[%s2 + $0x3f8] sm:$0xff]
    %v153 = vld [vmem:[#allocation2] sm:$0x3]
    %v156 = vcombine.high %v23, %v23
    %v158 = vunpack.c.l.s4 1983009808
    %v159 = vunpack.c.0.s8 %v158
    %v160 = vlaneseq
    %v161 = vshrl.u32 %v160, 7
    %v162 = vsub.s32 %v159, %v161
    %v163 = vrot.slane %v23, %v162
    %v165 = vunpack.c.l.s4 1983009808
    %v166 = vunpack.c.0.s8 %v165
    %v167 = vlaneseq
    %v168 = vshrl.u32 %v167, 7
    %v169 = vsub.s32 %v166, %v168
    %v170 = vrot.slane %v156, %v169
    %v171 = vcombine.high %v163, %v163
    %v172 = vcombine.high %v170, %v170
    %v173 = vcombine.high %v24, %v24
    %v175 = vunpack.c.l.s4 1983009808
    %v176 = vunpack.c.0.s8 %v175
    %v177 = vlaneseq
    %v178 = vshrl.u32 %v177, 7
    %v179 = vsub.s32 %v176, %v178
    %v180 = vrot.slane %v24, %v179
    %v182 = vunpack.c.l.s4 1983009808
    %v183 = vunpack.c.0.s8 %v182
    %v184 = vlaneseq
    %v185 = vshrl.u32 %v184, 7
    %v186 = vsub.s32 %v183, %v185
    %v187 = vrot.slane %v173, %v186
    %v188 = vcombine.high %v180, %v180
    %v189 = vcombine.high %v187, %v187
    %198 = vmatprep.subr.mxu0 0.0
    %199 = vmatpush1.msra.mxu0 %v25
    %200 = vmatprep.subr.mxu0 0.0
    %201 = vmatpush1.msra.mxu0 %v26
    %202 = vmatprep.subr.mxu0 0.0
    %203 = vmatpush1.msra.mxu0 %v27
    %204 = vmatprep.subr.mxu0 0.0
    %205 = vmatpush1.msra.mxu0 %v28
    %206 = vmatprep.subr.mxu0 0.0
    %207 = vmatpush1.msra.mxu0 %v29
    %208 = vmatprep.subr.mxu0 0.0
    %209 = vmatpush1.msra.mxu0 %v30
    %210 = vmatprep.subr.mxu0 0.0
    %211 = vmatpush1.msra.mxu0 %v31
    %212 = vmatprep.subr.mxu0 0.0
    %213 = vmatpush1.msra.mxu0 %v32
    %214 = vmatprep.subr.mxu0 0.0
    %215 = vmatpush1.msra.mxu0 %v33
    %216 = vmatprep.subr.mxu0 0.0
    %217 = vmatpush1.msra.mxu0 %v34
    %218 = vmatprep.subr.mxu0 0.0
    %219 = vmatpush1.msra.mxu0 %v35
    %220 = vmatprep.subr.mxu0 0.0
    %221 = vmatpush1.msra.mxu0 %v36
    %222 = vmatprep.subr.mxu0 0.0
    %223 = vmatpush1.msra.mxu0 %v37
    %224 = vmatprep.subr.mxu0 0.0
    %225 = vmatpush1.msra.mxu0 %v38
    %226 = vmatprep.subr.mxu0 0.0
    %227 = vmatpush1.msra.mxu0 %v39
    %228 = vmatprep.subr.mxu0 0.0
    %229 = vmatpush1.msra.mxu0 %v40
    %230 = vmatprep.subr.mxu0 0.0
    %231 = vmatpush1.msra.mxu0 %v41
    %232 = vmatprep.subr.mxu0 0.0
    %233 = vmatpush1.msra.mxu0 %v42
    %234 = vmatprep.subr.mxu0 0.0
    %235 = vmatpush1.msra.mxu0 %v43
    %236 = vmatprep.subr.mxu0 0.0
    %237 = vmatpush1.msra.mxu0 %v44
    %238 = vmatprep.subr.mxu0 0.0
    %239 = vmatpush1.msra.mxu0 %v45
    %240 = vmatprep.subr.mxu0 0.0
    %241 = vmatpush1.msra.mxu0 %v46
    %242 = vmatprep.subr.mxu0 0.0
    %243 = vmatpush1.msra.mxu0 %v47
    %244 = vmatprep.subr.mxu0 0.0
    %245 = vmatpush1.msra.mxu0 %v48
    %246 = vmatprep.subr.mxu0 0.0
    %247 = vmatpush1.msra.mxu0 %v49
    %248 = vmatprep.subr.mxu0 0.0
    %249 = vmatpush1.msra.mxu0 %v50
    %250 = vmatprep.subr.mxu0 0.0
    %251 = vmatpush1.msra.mxu0 %v51
    %252 = vmatprep.subr.mxu0 0.0
    %253 = vmatpush1.msra.mxu0 %v52
    %254 = vmatprep.subr.mxu0 0.0
    %255 = vmatpush1.msra.mxu0 %v53
    %256 = vmatprep.subr.mxu0 0.0
    %257 = vmatpush1.msra.mxu0 %v54
    %258 = vmatprep.subr.mxu0 0.0
    %259 = vmatpush1.msra.mxu0 %v55
    %260 = vmatprep.subr.mxu0 0.0
    %261 = vmatpush1.msra.mxu0 %v56
    %262 = vmatprep.mubr.f32.mxu0 %v171
    %263 = vmatmul.mubr.f32.gmra.mrb[0].mxu0 %v163
    %v264 = vpop.f32.mrb[0].mxu0
    %v265 = vadd.f32 0.0, %v264
    %v266 = vpop.f32.mrb[0].mxu0
    %267 = vdwg.mxu0
    %268 = vmatprep.subr.mxu0 0.0
    %269 = vmatpush1.msra.mxu0 %v57
    %270 = vmatprep.subr.mxu0 0.0
    %271 = vmatpush1.msra.mxu0 %v58
    %272 = vmatprep.subr.mxu0 0.0
    %273 = vmatpush1.msra.mxu0 %v59
    %274 = vmatprep.subr.mxu0 0.0
    %275 = vmatpush1.msra.mxu0 %v60
    %276 = vmatprep.subr.mxu0 0.0
    %277 = vmatpush1.msra.mxu0 %v61
    %278 = vmatprep.subr.mxu0 0.0
    %279 = vmatpush1.msra.mxu0 %v62
    %280 = vmatprep.subr.mxu0 0.0
    %281 = vmatpush1.msra.mxu0 %v63
    %282 = vmatprep.subr.mxu0 0.0
    %283 = vmatpush1.msra.mxu0 %v64
    %284 = vmatprep.subr.mxu0 0.0
    %285 = vmatpush1.msra.mxu0 %v65
    %286 = vmatprep.subr.mxu0 0.0
    %287 = vmatpush1.msra.mxu0 %v66
    %288 = vmatprep.subr.mxu0 0.0
    %289 = vmatpush1.msra.mxu0 %v67
    %290 = vmatprep.subr.mxu0 0.0
    %291 = vmatpush1.msra.mxu0 %v68
    %292 = vmatprep.subr.mxu0 0.0
    %293 = vmatpush1.msra.mxu0 %v69
    %294 = vmatprep.subr.mxu0 0.0
    %295 = vmatpush1.msra.mxu0 %v70
    %296 = vmatprep.subr.mxu0 0.0
    %297 = vmatpush1.msra.mxu0 %v71
    %298 = vmatprep.subr.mxu0 0.0
    %299 = vmatpush1.msra.mxu0 %v72
    %300 = vmatprep.subr.mxu0 0.0
    %301 = vmatpush1.msra.mxu0 %v73
    %302 = vmatprep.subr.mxu0 0.0
    %303 = vmatpush1.msra.mxu0 %v74
    %304 = vmatprep.subr.mxu0 0.0
    %305 = vmatpush1.msra.mxu0 %v75
    %306 = vmatprep.subr.mxu0 0.0
    %307 = vmatpush1.msra.mxu0 %v76
    %308 = vmatprep.subr.mxu0 0.0
    %309 = vmatpush1.msra.mxu0 %v77
    %310 = vmatprep.subr.mxu0 0.0
    %311 = vmatpush1.msra.mxu0 %v78
    %312 = vmatprep.subr.mxu0 0.0
    %313 = vmatpush1.msra.mxu0 %v79
    %314 = vmatprep.subr.mxu0 0.0
    %315 = vmatpush1.msra.mxu0 %v80
    %316 = vmatprep.subr.mxu0 0.0
    %317 = vmatpush1.msra.mxu0 %v81
    %318 = vmatprep.subr.mxu0 0.0
    %319 = vmatpush1.msra.mxu0 %v82
    %320 = vmatprep.subr.mxu0 0.0
    %321 = vmatpush1.msra.mxu0 %v83
    %322 = vmatprep.subr.mxu0 0.0
    %323 = vmatpush1.msra.mxu0 %v84
    %324 = vmatprep.subr.mxu0 0.0
    %325 = vmatpush1.msra.mxu0 %v85
    %326 = vmatprep.subr.mxu0 0.0
    %327 = vmatpush1.msra.mxu0 %v86
    %328 = vmatprep.subr.mxu0 0.0
    %329 = vmatpush1.msra.mxu0 %v87
    %330 = vmatprep.subr.mxu0 0.0
    %331 = vmatpush1.msra.mxu0 %v88
    %332 = vmatprep.mubr.f32.mxu0 %v172
    %333 = vmatmul.mubr.f32.gmra.mrb[0].mxu0 %v170
    %v334 = vpop.f32.mrb[0].mxu0
    %v335 = vadd.f32 %v265, %v334
    %v336 = vpop.f32.mrb[0].mxu0
    %337 = vdwg.mxu0
    %338 = vmatprep.subr.mxu0 0.0
    %339 = vmatpush1.msra.mxu0 %v89
    %340 = vmatprep.subr.mxu0 0.0
    %341 = vmatpush1.msra.mxu0 %v90
    %342 = vmatprep.subr.mxu0 0.0
    %343 = vmatpush1.msra.mxu0 %v91
    %344 = vmatprep.subr.mxu0 0.0
    %345 = vmatpush1.msra.mxu0 %v92
    %346 = vmatprep.subr.mxu0 0.0
    %347 = vmatpush1.msra.mxu0 %v93
    %348 = vmatprep.subr.mxu0 0.0
    %349 = vmatpush1.msra.mxu0 %v94
    %350 = vmatprep.subr.mxu0 0.0
    %351 = vmatpush1.msra.mxu0 %v95
    %352 = vmatprep.subr.mxu0 0.0
    %353 = vmatpush1.msra.mxu0 %v96
    %354 = vmatprep.subr.mxu0 0.0
    %355 = vmatpush1.msra.mxu0 %v97
    %356 = vmatprep.subr.mxu0 0.0
    %357 = vmatpush1.msra.mxu0 %v98
    %358 = vmatprep.subr.mxu0 0.0
    %359 = vmatpush1.msra.mxu0 %v99
    %360 = vmatprep.subr.mxu0 0.0
    %361 = vmatpush1.msra.mxu0 %v100
    %362 = vmatprep.subr.mxu0 0.0
    %363 = vmatpush1.msra.mxu0 %v101
    %364 = vmatprep.subr.mxu0 0.0
    %365 = vmatpush1.msra.mxu0 %v102
    %366 = vmatprep.subr.mxu0 0.0
    %367 = vmatpush1.msra.mxu0 %v103
    %368 = vmatprep.subr.mxu0 0.0
    %369 = vmatpush1.msra.mxu0 %v104
    %370 = vmatprep.subr.mxu0 0.0
    %371 = vmatpush1.msra.mxu0 %v105
    %372 = vmatprep.subr.mxu0 0.0
    %373 = vmatpush1.msra.mxu0 %v106
    %374 = vmatprep.subr.mxu0 0.0
    %375 = vmatpush1.msra.mxu0 %v107
    %376 = vmatprep.subr.mxu0 0.0
    %377 = vmatpush1.msra.mxu0 %v108
    %378 = vmatprep.subr.mxu0 0.0
    %379 = vmatpush1.msra.mxu0 %v109
    %380 = vmatprep.subr.mxu0 0.0
    %381 = vmatpush1.msra.mxu0 %v110
    %382 = vmatprep.subr.mxu0 0.0
    %383 = vmatpush1.msra.mxu0 %v111
    %384 = vmatprep.subr.mxu0 0.0
    %385 = vmatpush1.msra.mxu0 %v112
    %386 = vmatprep.subr.mxu0 0.0
    %387 = vmatpush1.msra.mxu0 %v113
    %388 = vmatprep.subr.mxu0 0.0
    %389 = vmatpush1.msra.mxu0 %v114
    %390 = vmatprep.subr.mxu0 0.0
    %391 = vmatpush1.msra.mxu0 %v115
    %392 = vmatprep.subr.mxu0 0.0
    %393 = vmatpush1.msra.mxu0 %v116
    %394 = vmatprep.subr.mxu0 0.0
    %395 = vmatpush1.msra.mxu0 %v117
    %396 = vmatprep.subr.mxu0 0.0
    %397 = vmatpush1.msra.mxu0 %v118
    %398 = vmatprep.subr.mxu0 0.0
    %399 = vmatpush1.msra.mxu0 %v119
    %400 = vmatprep.subr.mxu0 0.0
    %401 = vmatpush1.msra.mxu0 %v120
    %402 = vmatprep.mubr.f32.mxu0 %v188
    %403 = vmatmul.mubr.f32.gmra.mrb[0].mxu0 %v180
    %v404 = vpop.f32.mrb[0].mxu0
    %v405 = vadd.f32 %v335, %v404
    %v406 = vpop.f32.mrb[0].mxu0
    %407 = vdwg.mxu0
    %408 = vmatprep.subr.mxu0 0.0
    %409 = vmatpush1.msra.mxu0 %v121
    %410 = vmatprep.subr.mxu0 0.0
    %411 = vmatpush1.msra.mxu0 %v122
    %412 = vmatprep.subr.mxu0 0.0
    %413 = vmatpush1.msra.mxu0 %v123
    %414 = vmatprep.subr.mxu0 0.0
    %415 = vmatpush1.msra.mxu0 %v124
    %416 = vmatprep.subr.mxu0 0.0
    %417 = vmatpush1.msra.mxu0 %v125
    %418 = vmatprep.subr.mxu0 0.0
    %419 = vmatpush1.msra.mxu0 %v126
    %420 = vmatprep.subr.mxu0 0.0
    %421 = vmatpush1.msra.mxu0 %v127
    %422 = vmatprep.subr.mxu0 0.0
    %423 = vmatpush1.msra.mxu0 %v128
    %424 = vmatprep.subr.mxu0 0.0
    %425 = vmatpush1.msra.mxu0 %v129
    %426 = vmatprep.subr.mxu0 0.0
    %427 = vmatpush1.msra.mxu0 %v130
    %428 = vmatprep.subr.mxu0 0.0
    %429 = vmatpush1.msra.mxu0 %v131
    %430 = vmatprep.subr.mxu0 0.0
    %431 = vmatpush1.msra.mxu0 %v132
    %432 = vmatprep.subr.mxu0 0.0
    %433 = vmatpush1.msra.mxu0 %v133
    %434 = vmatprep.subr.mxu0 0.0
    %435 = vmatpush1.msra.mxu0 %v134
    %436 = vmatprep.subr.mxu0 0.0
    %437 = vmatpush1.msra.mxu0 %v135
    %438 = vmatprep.subr.mxu0 0.0
    %439 = vmatpush1.msra.mxu0 %v136
    %440 = vmatprep.subr.mxu0 0.0
    %441 = vmatpush1.msra.mxu0 %v137
    %442 = vmatprep.subr.mxu0 0.0
    %443 = vmatpush1.msra.mxu0 %v138
    %444 = vmatprep.subr.mxu0 0.0
    %445 = vmatpush1.msra.mxu0 %v139
    %446 = vmatprep.subr.mxu0 0.0
    %447 = vmatpush1.msra.mxu0 %v140
    %448 = vmatprep.subr.mxu0 0.0
    %449 = vmatpush1.msra.mxu0 %v141
    %450 = vmatprep.subr.mxu0 0.0
    %451 = vmatpush1.msra.mxu0 %v142
    %452 = vmatprep.subr.mxu0 0.0
    %453 = vmatpush1.msra.mxu0 %v143
    %454 = vmatprep.subr.mxu0 0.0
    %455 = vmatpush1.msra.mxu0 %v144
    %456 = vmatprep.subr.mxu0 0.0
    %457 = vmatpush1.msra.mxu0 %v145
    %458 = vmatprep.subr.mxu0 0.0
    %459 = vmatpush1.msra.mxu0 %v146
    %460 = vmatprep.subr.mxu0 0.0
    %461 = vmatpush1.msra.mxu0 %v147
    %462 = vmatprep.subr.mxu0 0.0
    %463 = vmatpush1.msra.mxu0 %v148
    %464 = vmatprep.subr.mxu0 0.0
    %465 = vmatpush1.msra.mxu0 %v149
    %466 = vmatprep.subr.mxu0 0.0
    %467 = vmatpush1.msra.mxu0 %v150
    %468 = vmatprep.subr.mxu0 0.0
    %469 = vmatpush1.msra.mxu0 %v151
    %470 = vmatprep.subr.mxu0 0.0
    %471 = vmatpush1.msra.mxu0 %v152
    %472 = vmatprep.mubr.f32.mxu0 %v189
    %473 = vmatmul.mubr.f32.gmra.mrb[0].mxu0 %v187
    %v474 = vpop.f32.mrb[0].mxu0
    %v475 = vadd.f32 %v405, %v474
    %v476 = vpop.f32.mrb[0].mxu0
    %477 = vdwg.mxu0
    %v478 = vadd.f32 %v153, %v475
    %vm479 = vcmask 123904
    %480 = vst.msk [vmem:[#allocation2] sm:$0x3] %vm479, %v478
    // Predicated region
    $region18: #{tpu_custom_call.1} parent=1 // pred_check
      %p481 = pneg %p17
    $region19: #{tpu_custom_call.1} parent=1 // pred_check_branch
      %483 = sbr.rel (%p481) target = $region21
    $region20: #{tpu_custom_call.1} parent=1 // pred_region
      %v484 = vld [vmem:[#allocation2] sm:$0x3]
      %v485 = vld [vmem:[%s3] sm:$0xff]
      %v486 = vld [vmem:[%s3 + $0x8] sm:$0xff]
      %v487 = vlaneseq
      %v488 = vand.u32 %v487, 127
      %s489 = sld [smem:[#allocation4]]
      %v490 = vstv %s489
      %vm491 = vcmp.eq.s32.totalorder %v488, %v490
      %v492 = vsel %vm491, 1, 0
      %v493 = vcvt.s32.f32 %v492
      %v494 = vmul.f32 %v484, %v493
      %v495 = vsel %vm479, %v494, 0.0
      %496 = vadd.xlane.f32.xlu0 %v495
      %v497 = vpop.xlane.xlu0 %496
      %v498 = vsel %vm479, %v484, -inf
      %499 = vmax.xlane.f32.xlu0 %v498
      %v500 = vpop.xlane.xlu0 %499
      %vm501 = vcmp.eq.f32.partialorder %v484, %v500
      %v502 = vsel %vm501, %v488, 16
      %v503 = vsel %vm479, %v502, 2147483647
      %v504 = vand.u32 %v503, 65535
      %v505 = vshra.s32 %v503, 16
      %v506 = vcvt.s32.f32 %v504
      %v507 = vcvt.s32.f32 %v505
      %508 = vmin.xlane.f32.xlu0 %v507
      %v509 = vpop.xlane.xlu0 %508
      %vm510 = vcmp.eq.f32.partialorder %v507, %v509
      %v511 = vsel %vm510, %v506, inf
      %512 = vmin.xlane.f32.xlu0 %v511
      %v513 = vpop.xlane.xlu0 %512
      %v514 = vcvt.f32.s32 %v513
      %v515 = vcvt.f32.s32 %v509
      %v516 = vshll.u32 %v515, 16
      %v517 = vadd.s32 %v516, %v514
      %vm518 = vcmp.eq.s32.totalorder %v488, %v517
      %v519 = vsel %vm518, -inf, %v484
      %v520 = vsel %vm479, %v519, -inf
      %521 = vmax.xlane.f32.xlu0 %v520
      %v522 = vpop.xlane.xlu0 %521
      %vm523 = vcmp.eq.f32.partialorder %v519, %v522
      %v524 = vsel %vm523, %v488, 16
      %v525 = vsel %vm479, %v524, 2147483647
      %v526 = vand.u32 %v525, 65535
      %v527 = vshra.s32 %v525, 16
      %v528 = vcvt.s32.f32 %v526
      %v529 = vcvt.s32.f32 %v527
      %530 = vmin.xlane.f32.xlu0 %v529
      %v531 = vpop.xlane.xlu0 %530
      %vm532 = vcmp.eq.f32.partialorder %v529, %v531
      %v533 = vsel %vm532, %v528, inf
      %534 = vmin.xlane.f32.xlu0 %v533
      %v535 = vpop.xlane.xlu0 %534
      %v536 = vcvt.f32.s32 %v535
      %v537 = vcvt.f32.s32 %v531
      %v538 = vshll.u32 %v537, 16
      %v539 = vadd.s32 %v538, %v536
      %vm540 = vcmp.eq.s32.totalorder %v488, %v539
      %v541 = vadd.f32 %v522, 0.0
      %v542 = vsel %vm540, 1, 0
      %v543 = vcvt.s32.f32 %v542
      %v544 = vadd.f32 %v543, 0.0
      %v545 = vsel %vm540, -inf, %v519
      %v546 = vsel %vm479, %v545, -inf
      %547 = vmax.xlane.f32.xlu0 %v546
      %v548 = vpop.xlane.xlu0 %547
      %vm549 = vcmp.eq.f32.partialorder %v545, %v548
      %v550 = vsel %vm549, %v488, 16
      %v551 = vsel %vm479, %v550, 2147483647
      %v552 = vand.u32 %v551, 65535
      %v553 = vshra.s32 %v551, 16
      %v554 = vcvt.s32.f32 %v552
      %v555 = vcvt.s32.f32 %v553
      %556 = vmin.xlane.f32.xlu0 %v555
      %v557 = vpop.xlane.xlu0 %556
      %vm558 = vcmp.eq.f32.partialorder %v555, %v557
      %v559 = vsel %vm558, %v554, inf
      %560 = vmin.xlane.f32.xlu0 %v559
      %v561 = vpop.xlane.xlu0 %560
      %v562 = vcvt.f32.s32 %v561
      %v563 = vcvt.f32.s32 %v557
      %v564 = vshll.u32 %v563, 16
      %v565 = vadd.s32 %v564, %v562
      %vm566 = vcmp.eq.s32.totalorder %v488, %v565
      %v567 = vadd.f32 %v541, %v548
      %v568 = vsel %vm566, 1, 0
      %v569 = vcvt.s32.f32 %v568
      %v570 = vadd.f32 %v544, %v569
      %v571 = vsel %vm566, -inf, %v545
      %v572 = vsel %vm479, %v571, -inf
      %573 = vmax.xlane.f32.xlu0 %v572
      %v574 = vpop.xlane.xlu0 %573
      %vm575 = vcmp.eq.f32.partialorder %v571, %v574
      %v576 = vsel %vm575, %v488, 16
      %v577 = vsel %vm479, %v576, 2147483647
      %v578 = vand.u32 %v577, 65535
      %v579 = vshra.s32 %v577, 16
      %v580 = vcvt.s32.f32 %v578
      %v581 = vcvt.s32.f32 %v579
      %582 = vmin.xlane.f32.xlu0 %v581
      %v583 = vpop.xlane.xlu0 %582
      %vm584 = vcmp.eq.f32.partialorder %v581, %v583
      %v585 = vsel %vm584, %v580, inf
      %586 = vmin.xlane.f32.xlu0 %v585
      %v587 = vpop.xlane.xlu0 %586
      %v588 = vcvt.f32.s32 %v587
      %v589 = vcvt.f32.s32 %v583
      %v590 = vshll.u32 %v589, 16
      %v591 = vadd.s32 %v590, %v588
      %vm592 = vcmp.eq.s32.totalorder %v488, %v591
      %v593 = vadd.f32 %v567, %v574
      %v594 = vsel %vm592, 1, 0
      %v595 = vcvt.s32.f32 %v594
      %v596 = vadd.f32 %v570, %v595
      %v597 = vsel %vm592, -inf, %v571
      %v598 = vsel %vm479, %v597, -inf
      %599 = vmax.xlane.f32.xlu0 %v598
      %v600 = vpop.xlane.xlu0 %599
      %vm601 = vcmp.eq.f32.partialorder %v597, %v600
      %v602 = vsel %vm601, %v488, 16
      %v603 = vsel %vm479, %v602, 2147483647
      %v604 = vand.u32 %v603, 65535
      %v605 = vshra.s32 %v603, 16
      %v606 = vcvt.s32.f32 %v604
      %v607 = vcvt.s32.f32 %v605
      %608 = vmin.xlane.f32.xlu0 %v607
      %v609 = vpop.xlane.xlu0 %608
      %vm610 = vcmp.eq.f32.partialorder %v607, %v609
      %v611 = vsel %vm610, %v606, inf
      %612 = vmin.xlane.f32.xlu0 %v611
      %v613 = vpop.xlane.xlu0 %612
      %v614 = vcvt.f32.s32 %v613
      %v615 = vcvt.f32.s32 %v609
      %v616 = vshll.u32 %v615, 16
      %v617 = vadd.s32 %v616, %v614
      %vm618 = vcmp.eq.s32.totalorder %v488, %v617
      %v619 = vadd.f32 %v593, %v600
      %v620 = vsel %vm618, 1, 0
      %v621 = vcvt.s32.f32 %v620
      %v622 = vadd.f32 %v596, %v621
      %v623 = vmul.f32 %v619, 0.25
      %v624 = vsub.f32 %v497, %v623
      %v625 = vmul.f32 %v622, 0.25
      %v626 = vsub.f32 %v493, %v625
      %vm627 = vcmask 130048
      %v629 = vsel %vm627, %v626, 0
      %631 = vmatprep.subr.mxu0 0.0
      %632 = vmatpush1.msra.mxu0 %v485
      %633 = vmatprep.subr.mxu0 0.0
      %634 = vmatpush1.msra.mxu0 %v486
      %635 = vmatprep.subr.mxu0 0.0
      %636 = vmatpush1.msra.mxu0 0.0
      %637 = vmatprep.subr.mxu0 0.0
      %638 = vmatpush1.msra.mxu0 0.0
      %639 = vmatprep.subr.mxu0 0.0
      %640 = vmatpush1.msra.mxu0 0.0
      %641 = vmatprep.subr.mxu0 0.0
      %642 = vmatpush1.msra.mxu0 0.0
      %643 = vmatprep.subr.mxu0 0.0
      %644 = vmatpush1.msra.mxu0 0.0
      %645 = vmatprep.subr.mxu0 0.0
      %646 = vmatpush1.msra.mxu0 0.0
      %647 = vmatprep.subr.mxu0 0.0
      %648 = vmatpush1.msra.mxu0 0.0
      %649 = vmatprep.subr.mxu0 0.0
      %650 = vmatpush1.msra.mxu0 0.0
      %651 = vmatprep.subr.mxu0 0.0
      %652 = vmatpush1.msra.mxu0 0.0
      %653 = vmatprep.subr.mxu0 0.0
      %654 = vmatpush1.msra.mxu0 0.0
      %655 = vmatprep.subr.mxu0 0.0
      %656 = vmatpush1.msra.mxu0 0.0
      %657 = vmatprep.subr.mxu0 0.0
      %658 = vmatpush1.msra.mxu0 0.0
      %659 = vmatprep.subr.mxu0 0.0
      %660 = vmatpush1.msra.mxu0 0.0
      %661 = vmatprep.subr.mxu0 0.0
      %662 = vmatpush1.msra.mxu0 0.0
      %663 = vmatprep.subr.mxu0 0.0
      %664 = vmatpush1.msra.mxu0 0.0
      %665 = vmatprep.subr.mxu0 0.0
      %666 = vmatpush1.msra.mxu0 0.0
      %667 = vmatprep.subr.mxu0 0.0
      %668 = vmatpush1.msra.mxu0 0.0
      %669 = vmatprep.subr.mxu0 0.0
      %670 = vmatpush1.msra.mxu0 0.0
      %671 = vmatprep.subr.mxu0 0.0
      %672 = vmatpush1.msra.mxu0 0.0
      %673 = vmatprep.subr.mxu0 0.0
      %674 = vmatpush1.msra.mxu0 0.0
      %675 = vmatprep.subr.mxu0 0.0
      %676 = vmatpush1.msra.mxu0 0.0
      %677 = vmatprep.subr.mxu0 0.0
      %678 = vmatpush1.msra.mxu0 0.0
      %679 = vmatprep.subr.mxu0 0.0
      %680 = vmatpush1.msra.mxu0 0.0
      %681 = vmatprep.subr.mxu0 0.0
      %682 = vmatpush1.msra.mxu0 0.0
      %683 = vmatprep.subr.mxu0 0.0
      %684 = vmatpush1.msra.mxu0 0.0
      %685 = vmatprep.subr.mxu0 0.0
      %686 = vmatpush1.msra.mxu0 0.0
      %687 = vmatprep.subr.mxu0 0.0
      %688 = vmatpush1.msra.mxu0 0.0
      %689 = vmatprep.subr.mxu0 0.0
      %690 = vmatpush1.msra.mxu0 0.0
      %691 = vmatprep.subr.mxu0 0.0
      %692 = vmatpush1.msra.mxu0 0.0
      %693 = vmatprep.subr.mxu0 0.0
      %694 = vmatpush1.msra.mxu0 0.0
      %695 = vmatprep.mubr.f32.mxu0 0.0
      %696 = vmatmul.mubr.f32.gmra.mrb[0].mxu0 %v629
      %v697 = vpop.f32.mrb[0].mxu0
      %v698 = vadd.f32 0.0, %v697
      %v699 = vpop.f32.mrb[0].mxu0
      %700 = vdwg.mxu0
      %v701 = vmul.f32 %v698, %v626
      %v702 = vsel %vm479, %v701, 0.0
      %703 = vadd.xlane.f32.xlu0 %v702
      %v704 = vpop.xlane.xlu0 %703
      %v705 = vmul.f32 %v704, 0.25
      %v706 = vrsqrt.pop %v705
      %v707 = vmul.f32 %v624, %v706
      %vm708 = vcmask 1041408
      %v709 = vsel %vm708, %v707, 0.0
      %v710 = vrot.slane %v709, 4
      %v711 = vadd.f32 %v709, %v710
      %v712 = vrot.slane %v711, 2
      %v713 = vadd.f32 %v711, %v712
      %v714 = vrot.slane %v713, 1
      %v715 = vadd.f32 %v713, %v714
      %v716 = vmul.f32 %v715, 0.5
      %vm717 = vcmask 0
      %718 = vst.msk [vmem:[#allocation5] sm:$0x1] %vm717, %v716
    $region21: #{tpu_custom_call.1} parent=1 // pred_fallthru
      _
    // Predicated region
    $region22: #{tpu_custom_call.1} parent=1 // pred_check
      _
    $region23: #{tpu_custom_call.1} parent=1 // pred_check_branch
      %720 = sbr.rel (0) target = $region25
    $region24: #{tpu_custom_call.1} parent=1 // pred_region
      %s722 = ssub.s32 16, 16
      %723 = vsyncadd [#allocation6], %s722
      %s725 = sshll.u32 [#allocation5], 4
      %s726 = int_to_ptr.vmem [resolvable:$true] %s725
      %728 = dma.vmem_to_hbm [thread:$0]  %s726, 16, %s4, [#allocation6]
    $region25: #{tpu_custom_call.1} parent=1 // pred_fallthru
      _
    // Predicated region
    $region26: #{tpu_custom_call.1} parent=1 // pred_check
      _
    $region27: #{tpu_custom_call.1} parent=1 // pred_check_branch
      %730 = sbr.rel (0) target = $region29
    $region28: #{tpu_custom_call.1} parent=1 // pred_region
      %731 = dma.done [#allocation6], 16
    $region29: #{tpu_custom_call.1} parent=1 // pred_fallthru
      _
    %732 = vsyncpa [#allocation6], 1

</llo_original>
